<compile_context>
chip_gen: v5e
topology: v5e:2x2
jax: 0.10.0
libtpu: 0.0.40
codegen_flags: <defaults>
</compile_context>

<pallas_src>
import functools
from typing import Any, NamedTuple

import jax
import jax.numpy as jnp
from jax.experimental import pallas as pl
from jax.experimental.pallas import tpu as pltpu

LANE = 128


def _round_up(x, m):
    return ((x + m - 1) // m) * m


class BridgeDims(NamedTuple):
    """Static (hashable) shape / dtype info produced by prepare_params."""
    D: int
    H: int
    S: int
    M: int
    Dp: int
    Hp: int
    Sp: int
    Mp: int
    compute_dtype: Any = jnp.float32
    out_dtype: Any = jnp.float32


def _tpu_hw_params():
    """(VMEM budget bytes, MXU-matched max batch tile) for this generation."""
    kind = ""
    try:
        kind = jax.devices()[0].device_kind.lower()
    except Exception:
        pass
    vmem_cap = 64 << 20                      # conservative default: v7x per-TC
    try:
        vmem_cap = int(pltpu.get_tpu_info().vmem_capacity_bytes)
    except Exception:
        pass
    budget = (vmem_cap * 3) // 4
    if "v7" in kind:
        budget = min(budget, 48 << 20)       # 64 MiB per TensorCore on v7x
    else:
        budget = min(budget, 100 << 20)      # 128 MiB physical on v5e / v6e
    budget = max(budget, 32 << 20)
    # v6e / v7x: 2x256x256 MXU -> 256-row batch tiles; v5e (4x128x128): 128.
    tile_b_max = 256 if ("v6" in kind or "v7" in kind) else 128
    return budget, tile_b_max


def prepare_params(params, state_dim, compute_dtype=jnp.float32,
                   out_dtype=jnp.float32):
    """Pad / cast / split the weights ONCE (hoisted out of the per-call path).

    params: dict with
        w1 (D, H), b1 (H,)          -- visual_fc Linear (x @ W layout)
        w2 (H + S, M), b2 (M,)      -- state_token_proj Linear
    Returns (arrays, dims).
    """
    w1, b1, w2, b2 = params["w1"], params["b1"], params["w2"], params["b2"]
    D, H = w1.shape
    M = w2.shape[1]
    S = int(state_dim)
    assert w2.shape[0] == H + S, (w2.shape, H, S)

    Dp, Hp, Mp = _round_up(D, LANE), _round_up(H, LANE), _round_up(M, LANE)
    Sp = _round_up(S, LANE) if S > 0 else 0

    arrays = {
        "w1": jnp.pad(w1, ((0, Dp - D), (0, Hp - H))).astype(compute_dtype),
        "b1": jnp.pad(b1, (0, Hp - H)).reshape(1, Hp).astype(jnp.float32),
        # W2 split into visual / state rows so the kernel never concatenates:
        #   concat([h, s]) @ W2 == h @ W2v + s @ W2s
        "w2v": jnp.pad(w2[:H], ((0, Hp - H), (0, Mp - M))).astype(compute_dtype),
        "b2": jnp.pad(b2, (0, Mp - M)).reshape(1, Mp).astype(jnp.float32),
    }
    if S > 0:
        arrays["w2s"] = jnp.pad(w2[H:], ((0, Sp - S), (0, Mp - M))).astype(compute_dtype)

    dims = BridgeDims(D, H, S, M, Dp, Hp, Sp, Mp, compute_dtype, out_dtype)
    return arrays, dims


def _vis_bridge_kernel(*refs, has_state):
    if has_state:
        (x_ref, s_ref, w1_ref, b1_ref, w2v_ref, w2s_ref, b2_ref,
         out_ref, h_ref) = refs
    else:
        x_ref, w1_ref, b1_ref, w2v_ref, b2_ref, out_ref, h_ref = refs
        s_ref = w2s_ref = None

    # visual_fc (Linear + ReLU): computed once per batch tile (j == 0), cached
    # in the VMEM scratch, reused for every output-column tile j.
    @pl.when(pl.program_id(1) == 0)
    def _():
        h = jnp.dot(x_ref[...], w1_ref[...], preferred_element_type=jnp.float32)
        h = jnp.maximum(h + b1_ref[...], 0.0)
        h_ref[...] = h.astype(h_ref.dtype)

    # state_token_proj on concat([h, s]) as a split matmul (f32 accumulation).
    z = jnp.dot(h_ref[...], w2v_ref[...], preferred_element_type=jnp.float32)
    if has_state:
        z = z + jnp.dot(s_ref[...], w2s_ref[...],
                        preferred_element_type=jnp.float32)
    out_ref[...] = (z + b2_ref[...]).astype(out_ref.dtype)


def _single_buffered_spec(shape):
    """Constant-index weight spec; single-buffered (DMA'd once, resident)."""
    idx = lambda i, j: (0, 0)
    try:
        return pl.BlockSpec(shape, idx, pipeline_mode=pl.Buffered(1))
    except TypeError:   # older JAX without pipeline_mode: fall back cleanly
        return pl.BlockSpec(shape, idx)


def mlp_vis_bridge_forward(vis_features, state_features, arrays, dims):
    """MlpVisBridge.forward for the (B, 1, D) path. Returns (B, 1, M)."""
    assert vis_features.ndim == 3 and vis_features.shape[1] == 1
    x = vis_features[:, 0]
    B = x.shape[0]
    assert x.shape[1] == dims.D

    cdt, odt = dims.compute_dtype, dims.out_dtype
    Dp, Hp, Sp, Mp = dims.Dp, dims.Hp, dims.Sp, dims.Mp
    has_state = dims.S > 0

    if has_state:
        s = jnp.concatenate(list(state_features), axis=-1)
        assert s.shape[-1] == dims.S

    # ---- per-generation tiling / VMEM budget --------------------------------
    vmem_budget, tile_b_max = _tpu_hw_params()
    # bf16 packs 16 rows per sublane register -> align small batches to 16.
    sub_align = 16 if jnp.dtype(cdt) == jnp.dtype(jnp.bfloat16) else 8
    tile_b = tile_b_max if B >= tile_b_max else _round_up(B, sub_align)
    Bp = _round_up(B, tile_b)

    csz = jnp.dtype(cdt).itemsize
    osz = jnp.dtype(odt).itemsize

    def vmem_estimate(tn):
        e = Dp * Hp * csz + Hp * 4          # W1 + b1 (single-buffered)
        e += tile_b * Hp * csz              # h scratch
        e += 2 * tile_b * Dp * csz          # x tile (double-buffered)
        e += 2 * Hp * tn * csz              # W2v column tile
        e += 2 * tn * 4                     # b2 tile
        e += 2 * tile_b * tn * osz          # out tile
        if has_state:
            e += 2 * tile_b * Sp * csz + 2 * Sp * tn * csz
        return e

    # Largest output-column tile (multiple of 128 dividing Mp) within budget.
    n_blocks = Mp // LANE
    tile_n = LANE
    for d in sorted((d for d in range(1, n_blocks + 1) if n_blocks % d == 0),
                    reverse=True):
        if vmem_estimate(LANE * d) <= vmem_budget:
            tile_n = LANE * d
            break
    # TODO(synk): if W1 alone (Dp*Hp) exceeds the VMEM budget, a third grid
    # axis over D with an f32 accumulator is needed; not required at realistic
    # vision-bridge sizes.

    # ---- padded activations --------------------------------------------------
    xp = jnp.pad(x, ((0, Bp - B), (0, Dp - dims.D))).astype(cdt)
    operands = [xp]
    in_specs = [pl.BlockSpec((tile_b, Dp), lambda i, j: (i, 0))]
    if has_state:
        sp_ = jnp.pad(s, ((0, Bp - B), (0, Sp - dims.S))).astype(cdt)
        operands.append(sp_)
        in_specs.append(pl.BlockSpec((tile_b, Sp), lambda i, j: (i, 0)))

    operands += [arrays["w1"], arrays["b1"], arrays["w2v"]]
    in_specs += [_single_buffered_spec((Dp, Hp)),
                 _single_buffered_spec((1, Hp)),
                 pl.BlockSpec((Hp, tile_n), lambda i, j: (0, j))]
    if has_state:
        operands.append(arrays["w2s"])
        in_specs.append(pl.BlockSpec((Sp, tile_n), lambda i, j: (0, j)))
    operands.append(arrays["b2"])
    in_specs.append(pl.BlockSpec((1, tile_n), lambda i, j: (0, j)))

    grid = (Bp // tile_b, Mp // tile_n)

    cost = pl.CostEstimate(
        flops=2 * Bp * Dp * Hp + 2 * Bp * (Hp + Sp) * Mp,
        transcendentals=0,
        bytes_accessed=(Bp * (Dp + Sp) * csz + Dp * Hp * csz
                        + (Hp + Sp) * Mp * csz + (Hp + Mp) * 4
                        + Bp * Mp * osz),
    )

    out = pl.pallas_call(
        functools.partial(_vis_bridge_kernel, has_state=has_state),
        out_shape=jax.ShapeDtypeStruct((Bp, Mp), odt),
        grid=grid,
        in_specs=in_specs,
        out_specs=pl.BlockSpec((tile_b, tile_n), lambda i, j: (i, j)),
        scratch_shapes=[pltpu.VMEM((tile_b, Hp), cdt)],
        compiler_params=pltpu.CompilerParams(
            # Batch tiles shard across TensorCores; the M axis carries the
            # h scratch across steps so it must stay "arbitrary".
            dimension_semantics=("parallel", "arbitrary"),
            vmem_limit_bytes=int(vmem_budget),
        ),
        cost_estimate=cost,
    )(*operands)

    # Strip padding; unsqueeze(-2) -> (B, 1, M).
    return out[:B, :dims.M][:, None, :]


def init_params(key, input_size, hidden_size, state_dim, llm_d_model):
    """Deterministic init mimicking nn.Linear default (uniform +-1/sqrt(fan_in))."""
    k1, k2, k3, k4 = jax.random.split(key, 4)
    lim1 = 1.0 / jnp.sqrt(input_size)
    lim2 = 1.0 / jnp.sqrt(hidden_size + state_dim)
    return {
        # stored transposed relative to torch (in, out) so the kernel does x @ W
        "w1": jax.random.uniform(k1, (input_size, hidden_size), jnp.float32,
                                 -lim1, lim1),
        "b1": jax.random.uniform(k2, (hidden_size,), jnp.float32, -lim1, lim1),
        "w2": jax.random.uniform(k3, (hidden_size + state_dim, llm_d_model),
                                 jnp.float32, -lim2, lim2),
        "b2": jax.random.uniform(k4, (llm_d_model,), jnp.float32, -lim2, lim2),
    }


def _reference(vis_features, state_features, params):
    x = vis_features[:, 0]
    h = jnp.maximum(x @ params["w1"] + params["b1"], 0.0)
    cat = jnp.concatenate([h] + list(state_features), axis=-1)
    z = cat @ params["w2"] + params["b2"]
    return z[:, None, :]


if __name__ == "__main__":
    # Small shapes consistent with the module:
    #   vis_features: (batch=2, 1, input_size=16)
    #   state obs   : two spaces of dims 3 and 5 -> state_dim = 8
    #   hidden_size = 32, llm.d_model = 32
    B, D, H, M = 2, 16, 32, 32
    state_dims = (3, 5)
    S = sum(state_dims)

    key = jax.random.PRNGKey(0)
    kp, kv, ks1, ks2, kp2 = jax.random.split(key, 5)

    params = init_params(kp, D, H, S, M)
    vis_features = jax.random.normal(kv, (B, 1, D), jnp.float32)
    obs = {
        "state_a": jax.random.normal(ks1, (B, state_dims[0]), jnp.float32),
        "state_b": jax.random.normal(ks2, (B, state_dims[1]), jnp.float32),
    }
    state_features = [obs[k] for k in ("state_a", "state_b")]
    ref = _reference(vis_features, state_features, params)

    # 1) f32 path -- weights prepared ONCE, forward jit-compiled (dims static).
    arrays, dims = prepare_params(params, S, compute_dtype=jnp.float32)
    fwd = jax.jit(functools.partial(mlp_vis_bridge_forward, dims=dims))
    out = jax.block_until_ready(fwd(vis_features, state_features, arrays))
    assert out.shape == (B, 1, M), out.shape
    assert jnp.allclose(out, ref, atol=1e-5, rtol=1e-5), "f32 mismatch vs reference"

    # 2) bf16 operands with f32 MXU accumulation (f32 output).
    arrays_bf, dims_bf = prepare_params(params, S, compute_dtype=jnp.bfloat16)
    out_bf = jax.block_until_ready(
        mlp_vis_bridge_forward(vis_features, state_features, arrays_bf, dims_bf))
    assert jnp.allclose(out_bf, ref, atol=5e-2, rtol=5e-2), "bf16 mismatch"

    # 3) No-state-observation path (len(state_features) == 0).
    params_ns = init_params(kp2, D, H, 0, M)
    arrays_ns, dims_ns = prepare_params(params_ns, 0, compute_dtype=jnp.float32)
    out_ns = jax.block_until_ready(
        mlp_vis_bridge_forward(vis_features, [], arrays_ns, dims_ns))
    ref_ns = _reference(vis_features, [], params_ns)
    assert out_ns.shape == (B, 1, M), out_ns.shape
    assert jnp.allclose(out_ns, ref_ns, atol=1e-5, rtol=1e-5), "no-state mismatch"

    print("KERNEL_OK")
</pallas_src>

<mosaic_0001>
module attributes {stable_mosaic.version = 11 : i64} {
  func.func @_vis_bridge_kernel(%arg0: i32, %arg1: i32, %arg2: memref<8x128xf32, #tpu.memory_space<vmem>>, %arg3: memref<8x128xf32, #tpu.memory_space<vmem>>, %arg4: memref<128x128xf32, #tpu.memory_space<vmem>>, %arg5: memref<1x128xf32, #tpu.memory_space<vmem>>, %arg6: memref<128x128xf32, #tpu.memory_space<vmem>>, %arg7: memref<128x128xf32, #tpu.memory_space<vmem>>, %arg8: memref<1x128xf32, #tpu.memory_space<vmem>>, %arg9: memref<8x128xf32, #tpu.memory_space<vmem>>, %arg10: memref<8x128xf32, #tpu.memory_space<vmem>>) attributes {dimension_semantics = [#tpu.dimension_semantics<parallel>, #tpu.dimension_semantics<arbitrary>], iteration_bounds = array<i64: 1, 1>, scalar_prefetch = 0 : i64, scratch_operands = 1 : i64, tpu.core_type = #tpu.core_type<tc>, window_params = [{transform_indices = @transform_0, window_bounds = array<i64: 8, 128>}, {transform_indices = @transform_1, window_bounds = array<i64: 8, 128>}, {pipeline_mode = #tpu.pipeline_mode<synchronous>, transform_indices = @transform_2, window_bounds = array<i64: 128, 128>}, {pipeline_mode = #tpu.pipeline_mode<synchronous>, transform_indices = @transform_3, window_bounds = array<i64: 1, 128>}, {transform_indices = @transform_4, window_bounds = array<i64: 128, 128>}, {transform_indices = @transform_5, window_bounds = array<i64: 128, 128>}, {transform_indices = @transform_6, window_bounds = array<i64: 1, 128>}, {transform_indices = @transform_7, window_bounds = array<i64: 8, 128>}]} {
    %c0_i32 = arith.constant 0 : i32
    %0 = arith.cmpi eq, %arg1, %c0_i32 : i32
    %1 = arith.extui %0 : i1 to i32
    %c0_i32_0 = arith.constant 0 : i32
    %2 = arith.cmpi ne, %1, %c0_i32_0 : i32
    scf.if %2 {
      %c0_13 = arith.constant 0 : index
      %c0_14 = arith.constant 0 : index
      %14 = vector.load %arg2[%c0_13, %c0_14] : memref<8x128xf32, #tpu.memory_space<vmem>>, vector<8x128xf32>
      %c0_15 = arith.constant 0 : index
      %c0_16 = arith.constant 0 : index
      %15 = vector.load %arg4[%c0_15, %c0_16] : memref<128x128xf32, #tpu.memory_space<vmem>>, vector<128x128xf32>
      %cst_17 = arith.constant dense<0.000000e+00> : vector<8x128xf32>
      %16 = tpu.matmul %14, %15, %cst_17 {dimension_numbers = #tpu.dot_dimension_numbers<[1], [0], [0], [1], [0, 0, 1, 1], [], []>} : vector<8x128xf32>, vector<128x128xf32>, vector<8x128xf32> -> vector<8x128xf32>
      %c0_18 = arith.constant 0 : index
      %c0_19 = arith.constant 0 : index
      %17 = vector.load %arg5[%c0_18, %c0_19] : memref<1x128xf32, #tpu.memory_space<vmem>>, vector<1x128xf32>
      %18 = vector.broadcast %17 : vector<1x128xf32> to vector<8x128xf32>
      %19 = arith.addf %16, %18 : vector<8x128xf32>
      %cst_20 = arith.constant 0.000000e+00 : f32
      %20 = vector.broadcast %cst_20 : f32 to vector<8x128xf32>
      %21 = arith.maximumf %19, %20 : vector<8x128xf32>
      %c0_21 = arith.constant 0 : index
      %c0_22 = arith.constant 0 : index
      %22 = vector.load %arg10[%c0_21, %c0_22] : memref<8x128xf32, #tpu.memory_space<vmem>>, vector<8x128xf32>
      tpu.vector_store %arg10[%c0_21, %c0_22], %21 {strides = array<i32>} : memref<8x128xf32, #tpu.memory_space<vmem>>, vector<8x128xf32>,
    } else {
    }
    %c0 = arith.constant 0 : index
    %c0_1 = arith.constant 0 : index
    %3 = vector.load %arg10[%c0, %c0_1] : memref<8x128xf32, #tpu.memory_space<vmem>>, vector<8x128xf32>
    %c0_2 = arith.constant 0 : index
    %c0_3 = arith.constant 0 : index
    %4 = vector.load %arg6[%c0_2, %c0_3] : memref<128x128xf32, #tpu.memory_space<vmem>>, vector<128x128xf32>
    %cst = arith.constant dense<0.000000e+00> : vector<8x128xf32>
    %5 = tpu.matmul %3, %4, %cst {dimension_numbers = #tpu.dot_dimension_numbers<[1], [0], [0], [1], [0, 0, 1, 1], [], []>} : vector<8x128xf32>, vector<128x128xf32>, vector<8x128xf32> -> vector<8x128xf32>
    %c0_4 = arith.constant 0 : index
    %c0_5 = arith.constant 0 : index
    %6 = vector.load %arg3[%c0_4, %c0_5] : memref<8x128xf32, #tpu.memory_space<vmem>>, vector<8x128xf32>
    %c0_6 = arith.constant 0 : index
    %c0_7 = arith.constant 0 : index
    %7 = vector.load %arg7[%c0_6, %c0_7] : memref<128x128xf32, #tpu.memory_space<vmem>>, vector<128x128xf32>
    %cst_8 = arith.constant dense<0.000000e+00> : vector<8x128xf32>
    %8 = tpu.matmul %6, %7, %cst_8 {dimension_numbers = #tpu.dot_dimension_numbers<[1], [0], [0], [1], [0, 0, 1, 1], [], []>} : vector<8x128xf32>, vector<128x128xf32>, vector<8x128xf32> -> vector<8x128xf32>
    %9 = arith.addf %5, %8 : vector<8x128xf32>
    %c0_9 = arith.constant 0 : index
    %c0_10 = arith.constant 0 : index
    %10 = vector.load %arg8[%c0_9, %c0_10] : memref<1x128xf32, #tpu.memory_space<vmem>>, vector<1x128xf32>
    %11 = vector.broadcast %10 : vector<1x128xf32> to vector<8x128xf32>
    %12 = arith.addf %9, %11 : vector<8x128xf32>
    %c0_11 = arith.constant 0 : index
    %c0_12 = arith.constant 0 : index
    %13 = vector.load %arg9[%c0_11, %c0_12] : memref<8x128xf32, #tpu.memory_space<vmem>>, vector<8x128xf32>
    tpu.vector_store %arg9[%c0_11, %c0_12], %12 {strides = array<i32>} : memref<8x128xf32, #tpu.memory_space<vmem>>, vector<8x128xf32>,
    return
  }
  func.func @transform_0(%arg0: i32, %arg1: i32) -> (i32, i32) {
    %c0_i32 = arith.constant 0 : i32
    %c0_i32_0 = arith.constant 0 : i32
    return %arg0, %c0_i32 : i32, i32
  }
  func.func @transform_1(%arg0: i32, %arg1: i32) -> (i32, i32) {
    %c0_i32 = arith.constant 0 : i32
    %c0_i32_0 = arith.constant 0 : i32
    return %arg0, %c0_i32 : i32, i32
  }
  func.func @transform_2(%arg0: i32, %arg1: i32) -> (i32, i32) {
    %c0_i32 = arith.constant 0 : i32
    %c0_i32_0 = arith.constant 0 : i32
    %c0_i32_1 = arith.constant 0 : i32
    return %c0_i32, %c0_i32_0 : i32, i32
  }
  func.func @transform_3(%arg0: i32, %arg1: i32) -> (i32, i32) {
    %c0_i32 = arith.constant 0 : i32
    %c0_i32_0 = arith.constant 0 : i32
    %c0_i32_1 = arith.constant 0 : i32
    return %c0_i32, %c0_i32_0 : i32, i32
  }
  func.func @transform_4(%arg0: i32, %arg1: i32) -> (i32, i32) {
    %c0_i32 = arith.constant 0 : i32
    %c0_i32_0 = arith.constant 0 : i32
    return %c0_i32, %arg1 : i32, i32
  }
  func.func @transform_5(%arg0: i32, %arg1: i32) -> (i32, i32) {
    %c0_i32 = arith.constant 0 : i32
    %c0_i32_0 = arith.constant 0 : i32
    return %c0_i32, %arg1 : i32, i32
  }
  func.func @transform_6(%arg0: i32, %arg1: i32) -> (i32, i32) {
    %c0_i32 = arith.constant 0 : i32
    %c0_i32_0 = arith.constant 0 : i32
    return %c0_i32, %arg1 : i32, i32
  }
  func.func @transform_7(%arg0: i32, %arg1: i32) -> (i32, i32) {
    %c0_i32 = arith.constant 0 : i32
    return %arg0, %arg1 : i32, i32
  }
}

</mosaic_0001>

<llo_original>
// kernel: mlp_vis_bridge_forward.1
$region0: #{mlp_vis_bridge_forward.1}
  #allocation0 [shape = 'u32[]', space=smem, size = 0x4, offset = 0x4, fixed_abs, tag = 'smem constant byte address 0x4 - core index']
  #allocation1 [shape = 'u32[72,128]{1,0:T(1,128)}', space=vmem, size = 0x9000, scoped, tag = 'internal scratch']
  #allocation2 [shape = 'f32[8,128]{1,0:T(8,128)}', space=vmem, size = 0x1000, scoped, tag = 'scratch operand']
  %s0 = inlined_call_operand.vmem [shape: f32[8,128], index: 0, kind: input, shape index: {}]
  %s1 = inlined_call_operand.vmem [shape: f32[8,128], index: 1, kind: input, shape index: {}]
  %s2 = inlined_call_operand.hbm [shape: f32[128,128], index: 2, kind: input, shape index: {}]
  %s3 = inlined_call_operand.vmem [shape: f32[1,128], index: 3, kind: input, shape index: {}]
  %s4 = inlined_call_operand.hbm [shape: f32[128,128], index: 4, kind: input, shape index: {}]
  %s5 = inlined_call_operand.hbm [shape: f32[128,128], index: 5, kind: input, shape index: {}]
  %s6 = inlined_call_operand.vmem [shape: f32[1,128], index: 6, kind: input, shape index: {}]
  %s7 = inlined_call_operand.vmem [shape: f32[8,128], index: 7, kind: output, shape index: {}]
  %s8 = sld [smem:[#allocation0]]
  $region54: #{mlp_vis_bridge_forward.1} parent=0
    _
  %s10 = ssub.s32 1, %s8
  %s11 = scalar_select 0, %s10, %s8
  $region1: #{mlp_vis_bridge_forward.1} parent=0
    #allocation3 [shape = 'u8[65536]{0}', space=vmem, size = 0x10000, scoped, tag = 'input window, operand 2, single buffered']
    #allocation4 [shape = 's32[1]{0}', space=sflag, size = 0x4, scoped, tag = 'scoped memory for mlp_vis_bridge_forward.1']
    #allocation5 [shape = 'u8[65536]{0}', space=vmem, size = 0x10000, scoped, tag = 'input window, operand 4, single buffered']
    #allocation6 [shape = 's32[1]{0}', space=sflag, size = 0x4, scoped, tag = 'scoped memory for mlp_vis_bridge_forward.1']
    #allocation7 [shape = 'u8[65536]{0}', space=vmem, size = 0x10000, scoped, tag = 'input window, operand 5, single buffered']
    %12 = vsyncpa [#allocation4], 0
    %13 = vsyncpa [#allocation6], 0
    // Predicated region
    $region2: #{mlp_vis_bridge_forward.1} parent=1 // pred_check
      _
    $region3: #{mlp_vis_bridge_forward.1} parent=1 // pred_check_branch
      %15 = sbr.rel (0) target = $region5
    $region4: #{mlp_vis_bridge_forward.1} parent=1 // pred_region
      _
    $region5: #{mlp_vis_bridge_forward.1} parent=1 // pred_fallthru
      _
    // Predicated region
    $region6: #{mlp_vis_bridge_forward.1} parent=1 // pred_check
      _
    $region7: #{mlp_vis_bridge_forward.1} parent=1 // pred_check_branch
      %17 = sbr.rel (0) target = $region9
    $region8: #{mlp_vis_bridge_forward.1} parent=1 // pred_region
      _
    $region9: #{mlp_vis_bridge_forward.1} parent=1 // pred_fallthru
      _
    // Predicated region
    $region10: #{mlp_vis_bridge_forward.1} parent=1 // pred_check
      _
    $region11: #{mlp_vis_bridge_forward.1} parent=1 // pred_check_branch
      %19 = sbr.rel (0) target = $region13
    $region12: #{mlp_vis_bridge_forward.1} parent=1 // pred_region
      %21 = vsyncadd [#allocation4], 0
      %s22 = sshll.u32 %s2, 4
      %s23 = int_to_ptr.hbm [resolvable:$true] %s22
      %s24 = sshll.u32 [#allocation3], 4
      %s25 = int_to_ptr.vmem [resolvable:$true] %s24
      %30 = dma.hbm_to_vmem [thread:$0]  %s23, 2048, %s25, [#allocation4], 128, 128, 8
    $region13: #{mlp_vis_bridge_forward.1} parent=1 // pred_fallthru
      _
    // Predicated region
    $region14: #{mlp_vis_bridge_forward.1} parent=1 // pred_check
      _
    $region15: #{mlp_vis_bridge_forward.1} parent=1 // pred_check_branch
      %32 = sbr.rel (0) target = $region17
    $region16: #{mlp_vis_bridge_forward.1} parent=1 // pred_region
      _
    $region17: #{mlp_vis_bridge_forward.1} parent=1 // pred_fallthru
      _
    // Predicated region
    $region18: #{mlp_vis_bridge_forward.1} parent=1 // pred_check
      _
    $region19: #{mlp_vis_bridge_forward.1} parent=1 // pred_check_branch
      %34 = sbr.rel (0) target = $region21
    $region20: #{mlp_vis_bridge_forward.1} parent=1 // pred_region
      %36 = vsyncadd [#allocation6], 0
      %s37 = sshll.u32 %s4, 4
      %s38 = int_to_ptr.hbm [resolvable:$true] %s37
      %s39 = sshll.u32 [#allocation5], 4
      %s40 = int_to_ptr.vmem [resolvable:$true] %s39
      %45 = dma.hbm_to_vmem [thread:$0]  %s38, 2048, %s40, [#allocation6], 128, 128, 8
    $region21: #{mlp_vis_bridge_forward.1} parent=1 // pred_fallthru
      _
    // Predicated region
    $region22: #{mlp_vis_bridge_forward.1} parent=1 // pred_check
      _
    $region23: #{mlp_vis_bridge_forward.1} parent=1 // pred_check_branch
      %47 = sbr.rel (0) target = $region25
    $region24: #{mlp_vis_bridge_forward.1} parent=1 // pred_region
      %49 = vsyncadd [#allocation6], 0
      %s50 = sshll.u32 %s5, 4
      %s51 = int_to_ptr.hbm [resolvable:$true] %s50
      %s52 = sshll.u32 [#allocation7], 4
      %s53 = int_to_ptr.vmem [resolvable:$true] %s52
      %58 = dma.hbm_to_vmem [thread:$0]  %s51, 2048, %s53, [#allocation6], 128, 128, 8
    $region25: #{mlp_vis_bridge_forward.1} parent=1 // pred_fallthru
      _
    // Predicated region
    $region26: #{mlp_vis_bridge_forward.1} parent=1 // pred_check
      _
    $region27: #{mlp_vis_bridge_forward.1} parent=1 // pred_check_branch
      %60 = sbr.rel (0) target = $region29
    $region28: #{mlp_vis_bridge_forward.1} parent=1 // pred_region
      _
    $region29: #{mlp_vis_bridge_forward.1} parent=1 // pred_fallthru
      _
    // Predicated region
    $region30: #{mlp_vis_bridge_forward.1} parent=1 // pred_check
      _
    $region31: #{mlp_vis_bridge_forward.1} parent=1 // pred_check_branch
      %62 = sbr.rel (0) target = $region33
    $region32: #{mlp_vis_bridge_forward.1} parent=1 // pred_region
      %64 = dma.done [#allocation4], 2048
    $region33: #{mlp_vis_bridge_forward.1} parent=1 // pred_fallthru
      _
    // Predicated region
    $region34: #{mlp_vis_bridge_forward.1} parent=1 // pred_check
      _
    $region35: #{mlp_vis_bridge_forward.1} parent=1 // pred_check_branch
      %66 = sbr.rel (0) target = $region37
    $region36: #{mlp_vis_bridge_forward.1} parent=1 // pred_region
      %68 = dma.done [#allocation6], 2048
    $region37: #{mlp_vis_bridge_forward.1} parent=1 // pred_fallthru
      _
    // Predicated region
    $region38: #{mlp_vis_bridge_forward.1} parent=1 // pred_check
      _
    $region39: #{mlp_vis_bridge_forward.1} parent=1 // pred_check_branch
      %70 = sbr.rel (0) target = $region41
    $region40: #{mlp_vis_bridge_forward.1} parent=1 // pred_region
      %72 = dma.done [#allocation6], 2048
    $region41: #{mlp_vis_bridge_forward.1} parent=1 // pred_fallthru
      _
    %p73 = scmp.eq.s32.totalorder 0, 0
    // Predicated region
    $region42: #{mlp_vis_bridge_forward.1} parent=1 // pred_check
      %p74 = pneg %p73
    $region43: #{mlp_vis_bridge_forward.1} parent=1 // pred_check_branch
      %76 = sbr.rel (%p74) target = $region45
    $region44: #{mlp_vis_bridge_forward.1} parent=1 // pred_region
      %v77 = vld [vmem:[%s0] sm:$0xff]
      %v78 = vld [vmem:[#allocation3] sm:$0xff]
      %v79 = vld [vmem:[#allocation3 + $0x8] sm:$0xff]
      %v80 = vld [vmem:[#allocation3 + $0x10] sm:$0xff]
      %v81 = vld [vmem:[#allocation3 + $0x18] sm:$0xff]
      %v82 = vld [vmem:[#allocation3 + $0x20] sm:$0xff]
      %v83 = vld [vmem:[#allocation3 + $0x28] sm:$0xff]
      %v84 = vld [vmem:[#allocation3 + $0x30] sm:$0xff]
      %v85 = vld [vmem:[#allocation3 + $0x38] sm:$0xff]
      %v86 = vld [vmem:[#allocation3 + $0x40] sm:$0xff]
      %v87 = vld [vmem:[#allocation3 + $0x48] sm:$0xff]
      %v88 = vld [vmem:[#allocation3 + $0x50] sm:$0xff]
      %v89 = vld [vmem:[#allocation3 + $0x58] sm:$0xff]
      %v90 = vld [vmem:[#allocation3 + $0x60] sm:$0xff]
      %v91 = vld [vmem:[#allocation3 + $0x68] sm:$0xff]
      %v92 = vld [vmem:[#allocation3 + $0x70] sm:$0xff]
      %v93 = vld [vmem:[#allocation3 + $0x78] sm:$0xff]
      %v94 = vld [vmem:[%s3] sm:$0x1]
      %v96 = vperm.slane %v94, 0
      %98 = vmatpush.msra.mxu0 %v93
      %99 = vmatpush.msra.mxu0 %v92
      %100 = vmatpush.msra.mxu0 %v91
      %101 = vmatpush.msra.mxu0 %v90
      %102 = vmatpush.msra.mxu0 %v89
      %103 = vmatpush.msra.mxu0 %v88
      %104 = vmatpush.msra.mxu0 %v87
      %105 = vmatpush.msra.mxu0 %v86
      %106 = vmatpush.msra.mxu0 %v85
      %107 = vmatpush.msra.mxu0 %v84
      %108 = vmatpush.msra.mxu0 %v83
      %109 = vmatpush.msra.mxu0 %v82
      %110 = vmatpush.msra.mxu0 %v81
      %111 = vmatpush.msra.mxu0 %v80
      %112 = vmatpush.msra.mxu0 %v79
      %113 = vmatpush.msra.mxu0 %v78
      %114 = vmatmul.f32.gmra.mxu0 %v77
      %v115 = vpop.f32.mrf.mxu0
      %v116 = vadd.f32 %v96, %v115
      %117 = vdwg.mxu0
      %v118 = vmax.f32 %v116, 0.0
      %119 = vst [vmem:[#allocation2] sm:$0xff] %v118
    $region45: #{mlp_vis_bridge_forward.1} parent=1 // pred_fallthru
      _
    %v120 = vld [vmem:[#allocation2] sm:$0xff]
    %v121 = vld [vmem:[#allocation5] sm:$0xff]
    %v122 = vld [vmem:[#allocation5 + $0x8] sm:$0xff]
    %v123 = vld [vmem:[#allocation5 + $0x10] sm:$0xff]
    %v124 = vld [vmem:[#allocation5 + $0x18] sm:$0xff]
    %v125 = vld [vmem:[#allocation5 + $0x20] sm:$0xff]
    %v126 = vld [vmem:[#allocation5 + $0x28] sm:$0xff]
    %v127 = vld [vmem:[#allocation5 + $0x30] sm:$0xff]
    %v128 = vld [vmem:[#allocation5 + $0x38] sm:$0xff]
    %v129 = vld [vmem:[#allocation5 + $0x40] sm:$0xff]
    %v130 = vld [vmem:[#allocation5 + $0x48] sm:$0xff]
    %v131 = vld [vmem:[#allocation5 + $0x50] sm:$0xff]
    %v132 = vld [vmem:[#allocation5 + $0x58] sm:$0xff]
    %v133 = vld [vmem:[#allocation5 + $0x60] sm:$0xff]
    %v134 = vld [vmem:[#allocation5 + $0x68] sm:$0xff]
    %v135 = vld [vmem:[#allocation5 + $0x70] sm:$0xff]
    %v136 = vld [vmem:[#allocation5 + $0x78] sm:$0xff]
    %v137 = vld [vmem:[%s1] sm:$0xff]
    %v138 = vld [vmem:[#allocation7] sm:$0xff]
    %v139 = vld [vmem:[#allocation7 + $0x8] sm:$0xff]
    %v140 = vld [vmem:[#allocation7 + $0x10] sm:$0xff]
    %v141 = vld [vmem:[#allocation7 + $0x18] sm:$0xff]
    %v142 = vld [vmem:[#allocation7 + $0x20] sm:$0xff]
    %v143 = vld [vmem:[#allocation7 + $0x28] sm:$0xff]
    %v144 = vld [vmem:[#allocation7 + $0x30] sm:$0xff]
    %v145 = vld [vmem:[#allocation7 + $0x38] sm:$0xff]
    %v146 = vld [vmem:[#allocation7 + $0x40] sm:$0xff]
    %v147 = vld [vmem:[#allocation7 + $0x48] sm:$0xff]
    %v148 = vld [vmem:[#allocation7 + $0x50] sm:$0xff]
    %v149 = vld [vmem:[#allocation7 + $0x58] sm:$0xff]
    %v150 = vld [vmem:[#allocation7 + $0x60] sm:$0xff]
    %v151 = vld [vmem:[#allocation7 + $0x68] sm:$0xff]
    %v152 = vld [vmem:[#allocation7 + $0x70] sm:$0xff]
    %v153 = vld [vmem:[#allocation7 + $0x78] sm:$0xff]
    %154 = vmatpush.msra.mxu0 %v153
    %155 = vmatpush.msra.mxu0 %v152
    %156 = vmatpush.msra.mxu0 %v151
    %157 = vmatpush.msra.mxu0 %v150
    %158 = vmatpush.msra.mxu0 %v149
    %159 = vmatpush.msra.mxu0 %v148
    %160 = vmatpush.msra.mxu0 %v147
    %161 = vmatpush.msra.mxu0 %v146
    %162 = vmatpush.msra.mxu0 %v145
    %163 = vmatpush.msra.mxu0 %v144
    %164 = vmatpush.msra.mxu0 %v143
    %165 = vmatpush.msra.mxu0 %v142
    %166 = vmatpush.msra.mxu0 %v141
    %167 = vmatpush.msra.mxu0 %v140
    %168 = vmatpush.msra.mxu0 %v139
    %169 = vmatpush.msra.mxu0 %v138
    %170 = vmatmul.f32.gmra.mxu0 %v137
    %v171 = vpop.f32.mrf.mxu0
    %v172 = vadd.f32 0.0, %v171
    %173 = vdwg.mxu0
    %174 = vmatpush.msra.mxu0 %v136
    %175 = vmatpush.msra.mxu0 %v135
    %176 = vmatpush.msra.mxu0 %v134
    %177 = vmatpush.msra.mxu0 %v133
    %178 = vmatpush.msra.mxu0 %v132
    %179 = vmatpush.msra.mxu0 %v131
    %180 = vmatpush.msra.mxu0 %v130
    %181 = vmatpush.msra.mxu0 %v129
    %182 = vmatpush.msra.mxu0 %v128
    %183 = vmatpush.msra.mxu0 %v127
    %184 = vmatpush.msra.mxu0 %v126
    %185 = vmatpush.msra.mxu0 %v125
    %186 = vmatpush.msra.mxu0 %v124
    %187 = vmatpush.msra.mxu0 %v123
    %188 = vmatpush.msra.mxu0 %v122
    %189 = vmatpush.msra.mxu0 %v121
    %190 = vmatmul.f32.gmra.mxu0 %v120
    %v191 = vpop.f32.mrf.mxu0
    %v192 = vadd.f32 %v172, %v191
    %193 = vdwg.mxu0
    %v194 = vld [vmem:[%s6] sm:$0x1]
    %v196 = vperm.slane %v194, 0
    %v198 = vadd.f32 %v192, %v196
    %199 = vst [vmem:[%s7] sm:$0xff] %v198
    // Predicated region
    $region46: #{mlp_vis_bridge_forward.1} parent=1 // pred_check
      _
    $region47: #{mlp_vis_bridge_forward.1} parent=1 // pred_check_branch
      %201 = sbr.rel (0) target = $region49
    $region48: #{mlp_vis_bridge_forward.1} parent=1 // pred_region
      _
    $region49: #{mlp_vis_bridge_forward.1} parent=1 // pred_fallthru
      _
    // Predicated region
    $region50: #{mlp_vis_bridge_forward.1} parent=1 // pred_check
      _
    $region51: #{mlp_vis_bridge_forward.1} parent=1 // pred_check_branch
      %203 = sbr.rel (0) target = $region53
    $region52: #{mlp_vis_bridge_forward.1} parent=1 // pred_region
      _
    $region53: #{mlp_vis_bridge_forward.1} parent=1 // pred_fallthru
      _
    %204 = vsyncpa [#allocation4], 1
    %205 = vsyncpa [#allocation6], 1

</llo_original>
